<compile_context>
chip_gen: v7x
topology: tpu7x:2x2x1
jax: 0.10.0
libtpu: 0.0.40
codegen_flags: <defaults>
</compile_context>

<pallas_src>
import functools

import jax
import jax.numpy as jnp
from jax.experimental import pallas as pl
from jax.experimental.pallas import tpu as pltpu

NUM_EMBEDDING = 64          # C  (from bigram.py)
HIDDEN = 4 * NUM_EMBEDDING  # 4C = 256
LANE = 128                  # TPU lane width; pad output channel dim to this
TILE_M = 128                # rows per grid step (multiple of 8 sublanes)
DROPOUT = 0.0               # p = 0.0 -> identity at forward time


# ---------------------------- Pallas kernel -------------------------------
def feedforward_kernel(x_ref, w1_ref, b1_ref, w2_ref, b2_ref, o_ref):
    """One (TILE_M, C) row block:  relu(x @ W1 + b1) @ W2p + b2p."""
    x = x_ref[...]                                          # (TILE_M, C) f32
    # Linear(C, 4C): bf16 operands on the MXU, f32 accumulation / bias.
    h = jnp.dot(x.astype(jnp.bfloat16), w1_ref[...],
                preferred_element_type=jnp.float32) + b1_ref[...]
    h = jnp.maximum(h, 0.0)                                 # ReLU in f32 (VPU)
    # Linear(4C, C) with the output channel padded to 128 lanes.
    y = jnp.dot(h.astype(jnp.bfloat16), w2_ref[...],
                preferred_element_type=jnp.float32) + b2_ref[...]
    o_ref[...] = y                                          # lane-dense store
    # Dropout(p=0.0) is the identity -> nothing to do.


# ------------------------------ wrapper ------------------------------------
@functools.partial(jax.jit, static_argnames=("tile_m",))
def feedforward(x, params, *, tile_m=TILE_M):
    """x: (..., C) float32.  Returns the same shape (..., C)."""
    C, H, CP = NUM_EMBEDDING, HIDDEN, LANE
    orig_shape = x.shape

    # Flatten all leading dims into rows; pad rows up to a tile multiple.
    x2 = x.reshape(-1, C).astype(jnp.float32)
    n = x2.shape[0]
    num_tiles = pl.cdiv(n, tile_m)
    n_pad = num_tiles * tile_m
    if n_pad != n:
        x2 = jnp.pad(x2, ((0, n_pad - n), (0, 0)))

    # Weights: bf16 for the MXU; biases stay f32.  Pad W2/b2 output dim
    # from C=64 to 128 lanes (zero columns, sliced off below).
    w1 = params["w1"].astype(jnp.bfloat16)                   # (C, 4C)
    b1 = params["b1"].astype(jnp.float32)                    # (1, 4C)
    w2p = jnp.pad(params["w2"], ((0, 0), (0, CP - C))).astype(jnp.bfloat16)
    b2p = jnp.pad(params["b2"], ((0, 0), (0, CP - C))).astype(jnp.float32)

    out = pl.pallas_call(
        feedforward_kernel,
        out_shape=jax.ShapeDtypeStruct((n_pad, CP), jnp.float32),
        grid_spec=pltpu.PrefetchScalarGridSpec(
            num_scalar_prefetch=0,
            grid=(num_tiles,),
            in_specs=[
                pl.BlockSpec((tile_m, C), lambda i: (i, 0)),   # x rows
                pl.BlockSpec((C, H), lambda i: (0, 0)),        # W1 (resident)
                pl.BlockSpec((1, H), lambda i: (0, 0)),        # b1
                pl.BlockSpec((H, CP), lambda i: (0, 0)),       # W2 (padded)
                pl.BlockSpec((1, CP), lambda i: (0, 0)),       # b2 (padded)
            ],
            out_specs=pl.BlockSpec((tile_m, CP), lambda i: (i, 0)),
        ),
        compiler_params=pltpu.CompilerParams(
            dimension_semantics=("parallel",)),
    )(x2, w1, b1, w2p, b2p)

    return out[:n, :C].reshape(orig_shape)


# ------------------------- pure-JAX reference -------------------------------
def feedforward_ref(x, params):
    h = jnp.maximum(x @ params["w1"] + params["b1"], 0.0)
    return h @ params["w2"] + params["b2"]


# -------------------- deterministic parameter construction -----------------
def init_params(key):
    C, H = NUM_EMBEDDING, HIDDEN
    k1, k2, k3, k4 = jax.random.split(key, 4)
    # torch.nn.Linear default init: U(-1/sqrt(fan_in), 1/sqrt(fan_in)).
    # Weights stored pre-transposed as (in, out) so the kernel does x @ W.
    bnd1 = 1.0 / (C ** 0.5)
    bnd2 = 1.0 / (H ** 0.5)
    return {
        "w1": jax.random.uniform(k1, (C, H), jnp.float32, -bnd1, bnd1),
        "b1": jax.random.uniform(k2, (1, H), jnp.float32, -bnd1, bnd1),
        "w2": jax.random.uniform(k3, (H, C), jnp.float32, -bnd2, bnd2),
        "b2": jax.random.uniform(k4, (1, C), jnp.float32, -bnd2, bnd2),
    }


if __name__ == "__main__":
    key = jax.random.PRNGKey(0)
    k_params, k_x = jax.random.split(key)

    params = init_params(k_params)

    B, T = 2, 16                                   # small example shapes
    x = jax.random.normal(k_x, (B, T, NUM_EMBEDDING), jnp.float32)

    y = feedforward(x, params)
    y = jax.block_until_ready(y)

    ref = feedforward_ref(x, params)               # full-f32 reference
    assert y.shape == x.shape
    assert bool(jnp.all(jnp.isfinite(y)))
    # bf16 MXU operands (f32 accumulation) vs f32 reference -> loose tolerance.
    assert jnp.allclose(y, ref, rtol=2e-2, atol=5e-2), float(
        jnp.max(jnp.abs(y - ref)))

    # TODO(synk): Dropout with p > 0 (training mode) would need
    # pltpu.prng_seed / prng_random_bits; p = 0.0 here makes it an identity.
    print("KERNEL_OK")
</pallas_src>

<mosaic_0001>
module attributes {stable_mosaic.version = 11 : i64} {
  func.func @feedforward_kernel(%arg0: i32, %arg1: memref<128x64xf32, #tpu.memory_space<vmem>>, %arg2: memref<64x256xbf16, #tpu.memory_space<vmem>>, %arg3: memref<1x256xf32, #tpu.memory_space<vmem>>, %arg4: memref<256x128xbf16, #tpu.memory_space<vmem>>, %arg5: memref<1x128xf32, #tpu.memory_space<vmem>>, %arg6: memref<128x128xf32, #tpu.memory_space<vmem>>) attributes {dimension_semantics = [#tpu.dimension_semantics<parallel>], iteration_bounds = array<i64: 1>, scalar_prefetch = 0 : i64, scratch_operands = 0 : i64, tpu.core_type = #tpu.core_type<tc>, window_params = [{transform_indices = @transform_0, window_bounds = array<i64: 128, 64>}, {pipeline_mode = #tpu.pipeline_mode<synchronous>, transform_indices = @transform_1, window_bounds = array<i64: 64, 256>}, {pipeline_mode = #tpu.pipeline_mode<synchronous>, transform_indices = @transform_2, window_bounds = array<i64: 1, 256>}, {pipeline_mode = #tpu.pipeline_mode<synchronous>, transform_indices = @transform_3, window_bounds = array<i64: 256, 128>}, {pipeline_mode = #tpu.pipeline_mode<synchronous>, transform_indices = @transform_4, window_bounds = array<i64: 1, 128>}, {transform_indices = @transform_5, window_bounds = array<i64: 128, 128>}]} {
    %c0 = arith.constant 0 : index
    %c0_0 = arith.constant 0 : index
    %0 = vector.load %arg1[%c0, %c0_0] : memref<128x64xf32, #tpu.memory_space<vmem>>, vector<128x64xf32>
    %1 = arith.truncf %0 : vector<128x64xf32> to vector<128x64xbf16>
    %c0_1 = arith.constant 0 : index
    %c0_2 = arith.constant 0 : index
    %2 = vector.load %arg2[%c0_1, %c0_2] : memref<64x256xbf16, #tpu.memory_space<vmem>>, vector<64x256xbf16>
    %cst = arith.constant dense<0.000000e+00> : vector<128x256xf32>
    %3 = tpu.matmul %1, %2, %cst {dimension_numbers = #tpu.dot_dimension_numbers<[1], [0], [0], [1], [0, 0, 1, 1], [], []>} : vector<128x64xbf16>, vector<64x256xbf16>, vector<128x256xf32> -> vector<128x256xf32>
    %c0_3 = arith.constant 0 : index
    %c0_4 = arith.constant 0 : index
    %4 = vector.load %arg3[%c0_3, %c0_4] : memref<1x256xf32, #tpu.memory_space<vmem>>, vector<1x256xf32>
    %5 = vector.broadcast %4 : vector<1x256xf32> to vector<128x256xf32>
    %6 = arith.addf %3, %5 : vector<128x256xf32>
    %cst_5 = arith.constant 0.000000e+00 : f32
    %7 = vector.broadcast %cst_5 : f32 to vector<128x256xf32>
    %8 = arith.maximumf %6, %7 : vector<128x256xf32>
    %9 = arith.truncf %8 : vector<128x256xf32> to vector<128x256xbf16>
    %c0_6 = arith.constant 0 : index
    %c0_7 = arith.constant 0 : index
    %10 = vector.load %arg4[%c0_6, %c0_7] : memref<256x128xbf16, #tpu.memory_space<vmem>>, vector<256x128xbf16>
    %cst_8 = arith.constant dense<0.000000e+00> : vector<128x128xf32>
    %11 = tpu.matmul %9, %10, %cst_8 {dimension_numbers = #tpu.dot_dimension_numbers<[1], [0], [0], [1], [0, 0, 1, 1], [], []>} : vector<128x256xbf16>, vector<256x128xbf16>, vector<128x128xf32> -> vector<128x128xf32>
    %c0_9 = arith.constant 0 : index
    %c0_10 = arith.constant 0 : index
    %12 = vector.load %arg5[%c0_9, %c0_10] : memref<1x128xf32, #tpu.memory_space<vmem>>, vector<1x128xf32>
    %13 = vector.broadcast %12 : vector<1x128xf32> to vector<128x128xf32>
    %14 = arith.addf %11, %13 : vector<128x128xf32>
    %c0_11 = arith.constant 0 : index
    %c0_12 = arith.constant 0 : index
    %15 = vector.load %arg6[%c0_11, %c0_12] : memref<128x128xf32, #tpu.memory_space<vmem>>, vector<128x128xf32>
    tpu.vector_store %arg6[%c0_11, %c0_12], %14 {strides = array<i32>} : memref<128x128xf32, #tpu.memory_space<vmem>>, vector<128x128xf32>,
    return
  }
  func.func @transform_0(%arg0: i32) -> (i32, i32) {
    %c0_i32 = arith.constant 0 : i32
    %c0_i32_0 = arith.constant 0 : i32
    return %arg0, %c0_i32 : i32, i32
  }
  func.func @transform_1(%arg0: i32) -> (i32, i32) {
    %c0_i32 = arith.constant 0 : i32
    %c0_i32_0 = arith.constant 0 : i32
    %c0_i32_1 = arith.constant 0 : i32
    return %c0_i32, %c0_i32_0 : i32, i32
  }
  func.func @transform_2(%arg0: i32) -> (i32, i32) {
    %c0_i32 = arith.constant 0 : i32
    %c0_i32_0 = arith.constant 0 : i32
    %c0_i32_1 = arith.constant 0 : i32
    return %c0_i32, %c0_i32_0 : i32, i32
  }
  func.func @transform_3(%arg0: i32) -> (i32, i32) {
    %c0_i32 = arith.constant 0 : i32
    %c0_i32_0 = arith.constant 0 : i32
    %c0_i32_1 = arith.constant 0 : i32
    return %c0_i32, %c0_i32_0 : i32, i32
  }
  func.func @transform_4(%arg0: i32) -> (i32, i32) {
    %c0_i32 = arith.constant 0 : i32
    %c0_i32_0 = arith.constant 0 : i32
    %c0_i32_1 = arith.constant 0 : i32
    return %c0_i32, %c0_i32_0 : i32, i32
  }
  func.func @transform_5(%arg0: i32) -> (i32, i32) {
    %c0_i32 = arith.constant 0 : i32
    %c0_i32_0 = arith.constant 0 : i32
    return %arg0, %c0_i32 : i32, i32
  }
}

</mosaic_0001>

<llo_original>
// kernel: feedforward.1
$region0: #{feedforward.1}
  #allocation0 [shape = 'u32[]', space=smem, size = 0x4, offset = 0x4, fixed_abs, tag = 'smem constant byte address 0x4 - core index']
  #allocation1 [shape = 'u32[144,128]{1,0:T(1,128)}', space=vmem, size = 0x12000, scoped, tag = 'internal scratch']
  %s0 = inlined_call_operand.vmem [shape: f32[128,64], index: 0, kind: input, shape index: {}]
  %s1 = inlined_call_operand.vmem [shape: bf16[64,256], index: 1, kind: input, shape index: {}]
  %s2 = inlined_call_operand.vmem [shape: f32[1,256], index: 2, kind: input, shape index: {}]
  %s3 = inlined_call_operand.vmem [shape: bf16[256,128], index: 3, kind: input, shape index: {}]
  %s4 = inlined_call_operand.vmem [shape: f32[1,128], index: 4, kind: input, shape index: {}]
  %s5 = inlined_call_operand.vmem [shape: f32[128,128], index: 5, kind: output, shape index: {}]
  %s6 = sld [smem:[#allocation0]]
  $region30: #{feedforward.1} parent=0
    _
  %s8 = ssub.s32 1, %s6
  %s9 = scalar_select 0, %s8, %s6
  // Predicated region
  $region2: #{feedforward.1} parent=0 // pred_check
    _
  $region3: #{feedforward.1} parent=0 // pred_check_branch
    %11 = sbr.rel (0) target = $region5
  $region4: #{feedforward.1} parent=0 // pred_region
    _
  $region5: #{feedforward.1} parent=0 // pred_fallthru
    _
  // Predicated region
  $region6: #{feedforward.1} parent=0 // pred_check
    _
  $region7: #{feedforward.1} parent=0 // pred_check_branch
    %13 = sbr.rel (0) target = $region9
  $region8: #{feedforward.1} parent=0 // pred_region
    _
  $region9: #{feedforward.1} parent=0 // pred_fallthru
    _
  // Predicated region
  $region10: #{feedforward.1} parent=0 // pred_check
    _
  $region11: #{feedforward.1} parent=0 // pred_check_branch
    %15 = sbr.rel (0) target = $region13
  $region12: #{feedforward.1} parent=0 // pred_region
    _
  $region13: #{feedforward.1} parent=0 // pred_fallthru
    _
  // Predicated region
  $region14: #{feedforward.1} parent=0 // pred_check
    _
  $region15: #{feedforward.1} parent=0 // pred_check_branch
    %17 = sbr.rel (0) target = $region17
  $region16: #{feedforward.1} parent=0 // pred_region
    _
  $region17: #{feedforward.1} parent=0 // pred_fallthru
    _
  // Predicated region
  $region18: #{feedforward.1} parent=0 // pred_check
    _
  $region19: #{feedforward.1} parent=0 // pred_check_branch
    %19 = sbr.rel (0) target = $region21
  $region20: #{feedforward.1} parent=0 // pred_region
    _
  $region21: #{feedforward.1} parent=0 // pred_fallthru
    _
  %v21 = vld [vmem:[%s0] sm:$0xff]
  %v22 = vld [vmem:[%s0 + $0x8] sm:$0xff]
  %v23 = vld [vmem:[%s0 + $0x10] sm:$0xff]
  %v24 = vld [vmem:[%s0 + $0x18] sm:$0xff]
  %v25 = vld [vmem:[%s0 + $0x20] sm:$0xff]
  %v26 = vld [vmem:[%s0 + $0x28] sm:$0xff]
  %v27 = vld [vmem:[%s0 + $0x30] sm:$0xff]
  %v28 = vld [vmem:[%s0 + $0x38] sm:$0xff]
  %v29 = vld [vmem:[%s0 + $0x40] sm:$0xff]
  %v30 = vld [vmem:[%s0 + $0x48] sm:$0xff]
  %v31 = vld [vmem:[%s0 + $0x50] sm:$0xff]
  %v32 = vld [vmem:[%s0 + $0x58] sm:$0xff]
  %v33 = vld [vmem:[%s0 + $0x60] sm:$0xff]
  %v34 = vld [vmem:[%s0 + $0x68] sm:$0xff]
  %v35 = vld [vmem:[%s0 + $0x70] sm:$0xff]
  %v36 = vld [vmem:[%s0 + $0x78] sm:$0xff]
  %v37 = vpack.c.bf16 %v22, %v21
  %v38 = vpack.c.bf16 %v24, %v23
  %v39 = vpack.c.bf16 %v26, %v25
  %v40 = vpack.c.bf16 %v28, %v27
  %v41 = vpack.c.bf16 %v30, %v29
  %v42 = vpack.c.bf16 %v32, %v31
  %v43 = vpack.c.bf16 %v34, %v33
  %v44 = vpack.c.bf16 %v36, %v35
  %v45 = vld [vmem:[%s1] sm:$0xff]
  %v46 = vld [vmem:[%s1 + $0x8] sm:$0xff]
  %v47 = vld [vmem:[%s1 + $0x10] sm:$0xff]
  %v48 = vld [vmem:[%s1 + $0x18] sm:$0xff]
  %v49 = vld [vmem:[%s1 + $0x20] sm:$0xff]
  %v50 = vld [vmem:[%s1 + $0x28] sm:$0xff]
  %v51 = vld [vmem:[%s1 + $0x30] sm:$0xff]
  %v52 = vld [vmem:[%s1 + $0x38] sm:$0xff]
  %v53 = vld [vmem:[%s2] sm:$0x3]
  %v55 = vlaneseq
  %v56 = vshrl.u32 %v55, 7
  %v57 = vsub.s32 0, %v56
  %v58 = vrot.slane %v53, %v57
  %v59 = vlaneseq
  %v60 = vshrl.u32 %v59, 7
  %v61 = vsub.s32 1, %v60
  %v62 = vrot.slane %v53, %v61
  %v73 = vunpack.c.l.b16 %v45
  %v74 = vunpack.c.h.b16 %v45
  %v75 = vunpack.c.l.b16 %v46
  %v76 = vunpack.c.h.b16 %v46
  %v77 = vunpack.c.l.b16 %v47
  %v78 = vunpack.c.h.b16 %v47
  %v79 = vunpack.c.l.b16 %v48
  %v80 = vunpack.c.h.b16 %v48
  %v81 = vunpack.c.l.b16 %v49
  %v82 = vunpack.c.h.b16 %v49
  %v83 = vunpack.c.l.b16 %v50
  %v84 = vunpack.c.h.b16 %v50
  %v85 = vunpack.c.l.b16 %v51
  %v86 = vunpack.c.h.b16 %v51
  %v87 = vunpack.c.l.b16 %v52
  %v88 = vunpack.c.h.b16 %v52
  %v89 = vpack.c.b16 %v75, %v73
  %v90 = vpack.c.b16 %v76, %v74
  %v91 = vpack.c.b16 %v79, %v77
  %v92 = vpack.c.b16 %v80, %v78
  %v93 = vpack.c.b16 %v83, %v81
  %v94 = vpack.c.b16 %v84, %v82
  %v95 = vpack.c.b16 %v87, %v85
  %v96 = vpack.c.b16 %v88, %v86
  %vm105 = vcmask 523264
  %v107 = vsel %vm105, %v37, 0
  %v110 = vsel %vm105, %v38, 0
  %v113 = vsel %vm105, %v39, 0
  %v116 = vsel %vm105, %v40, 0
  %v119 = vsel %vm105, %v41, 0
  %v122 = vsel %vm105, %v42, 0
  %v125 = vsel %vm105, %v43, 0
  %v128 = vsel %vm105, %v44, 0
  %130 = vmatprep.subr.bf16.mxu0 %v90
  %131 = vmatpush1.bf16.msra.mxu0 %v89
  %132 = vmatprep.subr.bf16.mxu0 %v92
  %133 = vmatpush1.bf16.msra.mxu0 %v91
  %134 = vmatprep.subr.bf16.mxu0 %v94
  %135 = vmatpush1.bf16.msra.mxu0 %v93
  %136 = vmatprep.subr.bf16.mxu0 %v96
  %137 = vmatpush1.bf16.msra.mxu0 %v95
  %138 = vmatprep.subr.bf16.mxu0 0
  %139 = vmatpush1.bf16.msra.mxu0 0
  %140 = vmatprep.subr.bf16.mxu0 0
  %141 = vmatpush1.bf16.msra.mxu0 0
  %142 = vmatprep.subr.bf16.mxu0 0
  %143 = vmatpush1.bf16.msra.mxu0 0
  %144 = vmatprep.subr.bf16.mxu0 0
  %145 = vmatpush1.bf16.msra.mxu0 0
  %146 = vmatprep.subr.bf16.mxu0 0
  %147 = vmatpush1.bf16.msra.mxu0 0
  %148 = vmatprep.subr.bf16.mxu0 0
  %149 = vmatpush1.bf16.msra.mxu0 0
  %150 = vmatprep.subr.bf16.mxu0 0
  %151 = vmatpush1.bf16.msra.mxu0 0
  %152 = vmatprep.subr.bf16.mxu0 0
  %153 = vmatpush1.bf16.msra.mxu0 0
  %154 = vmatprep.subr.bf16.mxu0 0
  %155 = vmatpush1.bf16.msra.mxu0 0
  %156 = vmatprep.subr.bf16.mxu0 0
  %157 = vmatpush1.bf16.msra.mxu0 0
  %158 = vmatprep.subr.bf16.mxu0 0
  %159 = vmatpush1.bf16.msra.mxu0 0
  %160 = vmatprep.subr.bf16.mxu0 0
  %161 = vmatpush1.bf16.msra.mxu0 0
  %162 = vmatprep.mubr.bf16.mxu0 0
  %163 = vmatmul.mubr.bf16.gmra.mrb[0].mxu0 %v107
  %v164 = vpop.f32.mrb[0].mxu0
  %v165 = vadd.f32 %v58, %v164
  %v166 = vpop.f32.mrb[0].mxu0
  %v167 = vadd.f32 %v62, %v166
  %v168 = vpop.f32.mrb[0].mxu0
  %v169 = vadd.f32 %v58, %v168
  %v170 = vpop.f32.mrb[0].mxu0
  %v171 = vadd.f32 %v62, %v170
  %172 = vmatprep.mubr.bf16.mxu0 0
  %173 = vmatmul.mubr.bf16.gmra.mrb[0].mxu0 %v110
  %v174 = vpop.f32.mrb[0].mxu0
  %v175 = vadd.f32 %v58, %v174
  %v176 = vpop.f32.mrb[0].mxu0
  %v177 = vadd.f32 %v62, %v176
  %v178 = vpop.f32.mrb[0].mxu0
  %v179 = vadd.f32 %v58, %v178
  %v180 = vpop.f32.mrb[0].mxu0
  %v181 = vadd.f32 %v62, %v180
  %182 = vmatprep.mubr.bf16.mxu0 0
  %183 = vmatmul.mubr.bf16.gmra.mrb[0].mxu0 %v113
  %v184 = vpop.f32.mrb[0].mxu0
  %v185 = vadd.f32 %v58, %v184
  %v186 = vpop.f32.mrb[0].mxu0
  %v187 = vadd.f32 %v62, %v186
  %v188 = vpop.f32.mrb[0].mxu0
  %v189 = vadd.f32 %v58, %v188
  %v190 = vpop.f32.mrb[0].mxu0
  %v191 = vadd.f32 %v62, %v190
  %192 = vmatprep.mubr.bf16.mxu0 0
  %193 = vmatmul.mubr.bf16.gmra.mrb[0].mxu0 %v116
  %v194 = vpop.f32.mrb[0].mxu0
  %v195 = vadd.f32 %v58, %v194
  %v196 = vpop.f32.mrb[0].mxu0
  %v197 = vadd.f32 %v62, %v196
  %v198 = vpop.f32.mrb[0].mxu0
  %v199 = vadd.f32 %v58, %v198
  %v200 = vpop.f32.mrb[0].mxu0
  %v201 = vadd.f32 %v62, %v200
  %202 = vmatprep.mubr.bf16.mxu0 0
  %203 = vmatmul.mubr.bf16.gmra.mrb[0].mxu0 %v119
  %v204 = vpop.f32.mrb[0].mxu0
  %v205 = vadd.f32 %v58, %v204
  %v206 = vpop.f32.mrb[0].mxu0
  %v207 = vadd.f32 %v62, %v206
  %v208 = vpop.f32.mrb[0].mxu0
  %v209 = vadd.f32 %v58, %v208
  %v210 = vpop.f32.mrb[0].mxu0
  %v211 = vadd.f32 %v62, %v210
  %212 = vmatprep.mubr.bf16.mxu0 0
  %213 = vmatmul.mubr.bf16.gmra.mrb[0].mxu0 %v122
  %v214 = vpop.f32.mrb[0].mxu0
  %v215 = vadd.f32 %v58, %v214
  %v216 = vpop.f32.mrb[0].mxu0
  %v217 = vadd.f32 %v62, %v216
  %v218 = vpop.f32.mrb[0].mxu0
  %v219 = vadd.f32 %v58, %v218
  %v220 = vpop.f32.mrb[0].mxu0
  %v221 = vadd.f32 %v62, %v220
  %222 = vmatprep.mubr.bf16.mxu0 0
  %223 = vmatmul.mubr.bf16.gmra.mrb[0].mxu0 %v125
  %v224 = vpop.f32.mrb[0].mxu0
  %v225 = vadd.f32 %v58, %v224
  %v226 = vpop.f32.mrb[0].mxu0
  %v227 = vadd.f32 %v62, %v226
  %v228 = vpop.f32.mrb[0].mxu0
  %v229 = vadd.f32 %v58, %v228
  %v230 = vpop.f32.mrb[0].mxu0
  %v231 = vadd.f32 %v62, %v230
  %232 = vmatprep.mubr.bf16.mxu0 0
  %233 = vmatmul.mubr.bf16.gmra.mrb[0].mxu0 %v128
  %v234 = vpop.f32.mrb[0].mxu0
  %v235 = vadd.f32 %v58, %v234
  %v236 = vpop.f32.mrb[0].mxu0
  %v237 = vadd.f32 %v62, %v236
  %v238 = vpop.f32.mrb[0].mxu0
  %v239 = vadd.f32 %v58, %v238
  %v240 = vpop.f32.mrb[0].mxu0
  %v241 = vadd.f32 %v62, %v240
  %242 = vdwg.mxu0
  %v243 = vmax.f32 %v165, 0.0
  %v244 = vmax.f32 %v167, 0.0
  %v245 = vmax.f32 %v169, 0.0
  %v246 = vmax.f32 %v171, 0.0
  %v247 = vmax.f32 %v175, 0.0
  %v248 = vmax.f32 %v177, 0.0
  %v249 = vmax.f32 %v179, 0.0
  %v250 = vmax.f32 %v181, 0.0
  %v251 = vmax.f32 %v185, 0.0
  %v252 = vmax.f32 %v187, 0.0
  %v253 = vmax.f32 %v189, 0.0
  %v254 = vmax.f32 %v191, 0.0
  %v255 = vmax.f32 %v195, 0.0
  %v256 = vmax.f32 %v197, 0.0
  %v257 = vmax.f32 %v199, 0.0
  %v258 = vmax.f32 %v201, 0.0
  %v259 = vmax.f32 %v205, 0.0
  %v260 = vmax.f32 %v207, 0.0
  %v261 = vmax.f32 %v209, 0.0
  %v262 = vmax.f32 %v211, 0.0
  %v263 = vmax.f32 %v215, 0.0
  %v264 = vmax.f32 %v217, 0.0
  %v265 = vmax.f32 %v219, 0.0
  %v266 = vmax.f32 %v221, 0.0
  %v267 = vmax.f32 %v225, 0.0
  %v268 = vmax.f32 %v227, 0.0
  %v269 = vmax.f32 %v229, 0.0
  %v270 = vmax.f32 %v231, 0.0
  %v271 = vmax.f32 %v235, 0.0
  %v272 = vmax.f32 %v237, 0.0
  %v273 = vmax.f32 %v239, 0.0
  %v274 = vmax.f32 %v241, 0.0
  %v275 = vpack.c.bf16 %v245, %v243
  %v276 = vpack.c.bf16 %v246, %v244
  %v277 = vpack.c.bf16 %v249, %v247
  %v278 = vpack.c.bf16 %v250, %v248
  %v279 = vpack.c.bf16 %v253, %v251
  %v280 = vpack.c.bf16 %v254, %v252
  %v281 = vpack.c.bf16 %v257, %v255
  %v282 = vpack.c.bf16 %v258, %v256
  %v283 = vpack.c.bf16 %v261, %v259
  %v284 = vpack.c.bf16 %v262, %v260
  %v285 = vpack.c.bf16 %v265, %v263
  %v286 = vpack.c.bf16 %v266, %v264
  %v287 = vpack.c.bf16 %v269, %v267
  %v288 = vpack.c.bf16 %v270, %v268
  %v289 = vpack.c.bf16 %v273, %v271
  %v290 = vpack.c.bf16 %v274, %v272
  %v291 = vld [vmem:[%s3] sm:$0xf]
  %v292 = vld [vmem:[%s3 + $0x4] sm:$0xf]
  %v293 = vld [vmem:[%s3 + $0x8] sm:$0xf]
  %v294 = vld [vmem:[%s3 + $0xc] sm:$0xf]
  %v295 = vld [vmem:[%s3 + $0x10] sm:$0xf]
  %v296 = vld [vmem:[%s3 + $0x14] sm:$0xf]
  %v297 = vld [vmem:[%s3 + $0x18] sm:$0xf]
  %v298 = vld [vmem:[%s3 + $0x1c] sm:$0xf]
  %v299 = vld [vmem:[%s3 + $0x20] sm:$0xf]
  %v300 = vld [vmem:[%s3 + $0x24] sm:$0xf]
  %v301 = vld [vmem:[%s3 + $0x28] sm:$0xf]
  %v302 = vld [vmem:[%s3 + $0x2c] sm:$0xf]
  %v303 = vld [vmem:[%s3 + $0x30] sm:$0xf]
  %v304 = vld [vmem:[%s3 + $0x34] sm:$0xf]
  %v305 = vld [vmem:[%s3 + $0x38] sm:$0xf]
  %v306 = vld [vmem:[%s3 + $0x3c] sm:$0xf]
  %v307 = vld [vmem:[%s3 + $0x40] sm:$0xf]
  %v308 = vld [vmem:[%s3 + $0x44] sm:$0xf]
  %v309 = vld [vmem:[%s3 + $0x48] sm:$0xf]
  %v310 = vld [vmem:[%s3 + $0x4c] sm:$0xf]
  %v311 = vld [vmem:[%s3 + $0x50] sm:$0xf]
  %v312 = vld [vmem:[%s3 + $0x54] sm:$0xf]
  %v313 = vld [vmem:[%s3 + $0x58] sm:$0xf]
  %v314 = vld [vmem:[%s3 + $0x5c] sm:$0xf]
  %v315 = vld [vmem:[%s3 + $0x60] sm:$0xf]
  %v316 = vld [vmem:[%s3 + $0x64] sm:$0xf]
  %v317 = vld [vmem:[%s3 + $0x68] sm:$0xf]
  %v318 = vld [vmem:[%s3 + $0x6c] sm:$0xf]
  %v319 = vld [vmem:[%s3 + $0x70] sm:$0xf]
  %v320 = vld [vmem:[%s3 + $0x74] sm:$0xf]
  %v321 = vld [vmem:[%s3 + $0x78] sm:$0xf]
  %v322 = vld [vmem:[%s3 + $0x7c] sm:$0xf]
  %v323 = vld [vmem:[%s4] sm:$0x1]
  %v325 = vlaneseq
  %v326 = vshrl.u32 %v325, 7
  %v327 = vsub.s32 0, %v326
  %v328 = vrot.slane %v323, %v327
  %v362 = vunpack.c.l.b16 %v291
  %v363 = vunpack.c.l.b16 %v292
  %v364 = vunpack.c.l.b16 %v293
  %v365 = vunpack.c.l.b16 %v294
  %v366 = vunpack.c.l.b16 %v295
  %v367 = vunpack.c.l.b16 %v296
  %v368 = vunpack.c.l.b16 %v297
  %v369 = vunpack.c.l.b16 %v298
  %v370 = vunpack.c.l.b16 %v299
  %v371 = vunpack.c.l.b16 %v300
  %v372 = vunpack.c.l.b16 %v301
  %v373 = vunpack.c.l.b16 %v302
  %v374 = vunpack.c.l.b16 %v303
  %v375 = vunpack.c.l.b16 %v304
  %v376 = vunpack.c.l.b16 %v305
  %v377 = vunpack.c.l.b16 %v306
  %v378 = vunpack.c.l.b16 %v307
  %v379 = vunpack.c.l.b16 %v308
  %v380 = vunpack.c.l.b16 %v309
  %v381 = vunpack.c.l.b16 %v310
  %v382 = vunpack.c.l.b16 %v311
  %v383 = vunpack.c.l.b16 %v312
  %v384 = vunpack.c.l.b16 %v313
  %v385 = vunpack.c.l.b16 %v314
  %v386 = vunpack.c.l.b16 %v315
  %v387 = vunpack.c.l.b16 %v316
  %v388 = vunpack.c.l.b16 %v317
  %v389 = vunpack.c.l.b16 %v318
  %v390 = vunpack.c.l.b16 %v319
  %v391 = vunpack.c.l.b16 %v320
  %v392 = vunpack.c.l.b16 %v321
  %v393 = vunpack.c.l.b16 %v322
  %v394 = vpack.c.b16 %v363, %v362
  %v395 = vpack.c.b16 %v365, %v364
  %v396 = vpack.c.b16 %v367, %v366
  %v397 = vpack.c.b16 %v369, %v368
  %v398 = vpack.c.b16 %v371, %v370
  %v399 = vpack.c.b16 %v373, %v372
  %v400 = vpack.c.b16 %v375, %v374
  %v401 = vpack.c.b16 %v377, %v376
  %v402 = vpack.c.b16 %v379, %v378
  %v403 = vpack.c.b16 %v381, %v380
  %v404 = vpack.c.b16 %v383, %v382
  %v405 = vpack.c.b16 %v385, %v384
  %v406 = vpack.c.b16 %v387, %v386
  %v407 = vpack.c.b16 %v389, %v388
  %v408 = vpack.c.b16 %v391, %v390
  %v409 = vpack.c.b16 %v393, %v392
  %426 = vmatprep.subr.bf16.mxu0 0
  %427 = vmatpush1.bf16.msra.mxu0 %v394
  %428 = vmatprep.subr.bf16.mxu0 0
  %429 = vmatpush1.bf16.msra.mxu0 %v395
  %430 = vmatprep.subr.bf16.mxu0 0
  %431 = vmatpush1.bf16.msra.mxu0 %v396
  %432 = vmatprep.subr.bf16.mxu0 0
  %433 = vmatpush1.bf16.msra.mxu0 %v397
  %434 = vmatprep.subr.bf16.mxu0 0
  %435 = vmatpush1.bf16.msra.mxu0 %v398
  %436 = vmatprep.subr.bf16.mxu0 0
  %437 = vmatpush1.bf16.msra.mxu0 %v399
  %438 = vmatprep.subr.bf16.mxu0 0
  %439 = vmatpush1.bf16.msra.mxu0 %v400
  %440 = vmatprep.subr.bf16.mxu0 0
  %441 = vmatpush1.bf16.msra.mxu0 %v401
  %442 = vmatprep.subr.bf16.mxu0 0
  %443 = vmatpush1.bf16.msra.mxu0 %v402
  %444 = vmatprep.subr.bf16.mxu0 0
  %445 = vmatpush1.bf16.msra.mxu0 %v403
  %446 = vmatprep.subr.bf16.mxu0 0
  %447 = vmatpush1.bf16.msra.mxu0 %v404
  %448 = vmatprep.subr.bf16.mxu0 0
  %449 = vmatpush1.bf16.msra.mxu0 %v405
  %450 = vmatprep.subr.bf16.mxu0 0
  %451 = vmatpush1.bf16.msra.mxu0 %v406
  %452 = vmatprep.subr.bf16.mxu0 0
  %453 = vmatpush1.bf16.msra.mxu0 %v407
  %454 = vmatprep.subr.bf16.mxu0 0
  %455 = vmatpush1.bf16.msra.mxu0 %v408
  %456 = vmatprep.subr.bf16.mxu0 0
  %457 = vmatpush1.bf16.msra.mxu0 %v409
  %458 = vmatprep.mubr.bf16.mxu0 %v276
  %459 = vmatmul.mubr.bf16.gmra.mrb[0].mxu0 %v275
  %v460 = vpop.f32.mrb[0].mxu0
  %v461 = vadd.f32 %v328, %v460
  %v462 = vpop.f32.mrb[0].mxu0
  %v463 = vpop.f32.mrb[0].mxu0
  %v464 = vadd.f32 %v328, %v463
  %v465 = vpop.f32.mrb[0].mxu0
  %466 = vmatprep.mubr.bf16.mxu0 %v278
  %467 = vmatmul.mubr.bf16.gmra.mrb[0].mxu0 %v277
  %v468 = vpop.f32.mrb[0].mxu0
  %v469 = vadd.f32 %v328, %v468
  %v470 = vpop.f32.mrb[0].mxu0
  %v471 = vpop.f32.mrb[0].mxu0
  %v472 = vadd.f32 %v328, %v471
  %v473 = vpop.f32.mrb[0].mxu0
  %474 = vmatprep.mubr.bf16.mxu0 %v280
  %475 = vmatmul.mubr.bf16.gmra.mrb[0].mxu0 %v279
  %v476 = vpop.f32.mrb[0].mxu0
  %v477 = vadd.f32 %v328, %v476
  %v478 = vpop.f32.mrb[0].mxu0
  %v479 = vpop.f32.mrb[0].mxu0
  %v480 = vadd.f32 %v328, %v479
  %v481 = vpop.f32.mrb[0].mxu0
  %482 = vmatprep.mubr.bf16.mxu0 %v282
  %483 = vmatmul.mubr.bf16.gmra.mrb[0].mxu0 %v281
  %v484 = vpop.f32.mrb[0].mxu0
  %v485 = vadd.f32 %v328, %v484
  %v486 = vpop.f32.mrb[0].mxu0
  %v487 = vpop.f32.mrb[0].mxu0
  %v488 = vadd.f32 %v328, %v487
  %v489 = vpop.f32.mrb[0].mxu0
  %490 = vmatprep.mubr.bf16.mxu0 %v284
  %491 = vmatmul.mubr.bf16.gmra.mrb[0].mxu0 %v283
  %v492 = vpop.f32.mrb[0].mxu0
  %v493 = vadd.f32 %v328, %v492
  %v494 = vpop.f32.mrb[0].mxu0
  %v495 = vpop.f32.mrb[0].mxu0
  %v496 = vadd.f32 %v328, %v495
  %v497 = vpop.f32.mrb[0].mxu0
  %498 = vmatprep.mubr.bf16.mxu0 %v286
  %499 = vmatmul.mubr.bf16.gmra.mrb[0].mxu0 %v285
  %v500 = vpop.f32.mrb[0].mxu0
  %v501 = vadd.f32 %v328, %v500
  %v502 = vpop.f32.mrb[0].mxu0
  %v503 = vpop.f32.mrb[0].mxu0
  %v504 = vadd.f32 %v328, %v503
  %v505 = vpop.f32.mrb[0].mxu0
  %506 = vmatprep.mubr.bf16.mxu0 %v288
  %507 = vmatmul.mubr.bf16.gmra.mrb[0].mxu0 %v287
  %v508 = vpop.f32.mrb[0].mxu0
  %v509 = vadd.f32 %v328, %v508
  %v510 = vpop.f32.mrb[0].mxu0
  %v511 = vpop.f32.mrb[0].mxu0
  %v512 = vadd.f32 %v328, %v511
  %v513 = vpop.f32.mrb[0].mxu0
  %514 = vmatprep.mubr.bf16.mxu0 %v290
  %515 = vmatmul.mubr.bf16.gmra.mrb[0].mxu0 %v289
  %v516 = vpop.f32.mrb[0].mxu0
  %v517 = vadd.f32 %v328, %v516
  %v518 = vpop.f32.mrb[0].mxu0
  %v519 = vpop.f32.mrb[0].mxu0
  %v520 = vadd.f32 %v328, %v519
  %v521 = vpop.f32.mrb[0].mxu0
  %522 = vdwg.mxu0
  %523 = vst [vmem:[%s5] sm:$0xff] %v461
  %524 = vst [vmem:[%s5 + $0x8] sm:$0xff] %v464
  %525 = vst [vmem:[%s5 + $0x10] sm:$0xff] %v469
  %526 = vst [vmem:[%s5 + $0x18] sm:$0xff] %v472
  %527 = vst [vmem:[%s5 + $0x20] sm:$0xff] %v477
  %528 = vst [vmem:[%s5 + $0x28] sm:$0xff] %v480
  %529 = vst [vmem:[%s5 + $0x30] sm:$0xff] %v485
  %530 = vst [vmem:[%s5 + $0x38] sm:$0xff] %v488
  %531 = vst [vmem:[%s5 + $0x40] sm:$0xff] %v493
  %532 = vst [vmem:[%s5 + $0x48] sm:$0xff] %v496
  %533 = vst [vmem:[%s5 + $0x50] sm:$0xff] %v501
  %534 = vst [vmem:[%s5 + $0x58] sm:$0xff] %v504
  %535 = vst [vmem:[%s5 + $0x60] sm:$0xff] %v509
  %536 = vst [vmem:[%s5 + $0x68] sm:$0xff] %v512
  %537 = vst [vmem:[%s5 + $0x70] sm:$0xff] %v517
  %538 = vst [vmem:[%s5 + $0x78] sm:$0xff] %v520
  // Predicated region
  $region22: #{feedforward.1} parent=0 // pred_check
    _
  $region23: #{feedforward.1} parent=0 // pred_check_branch
    %540 = sbr.rel (0) target = $region25
  $region24: #{feedforward.1} parent=0 // pred_region
    _
  $region25: #{feedforward.1} parent=0 // pred_fallthru
    _
  // Predicated region
  $region26: #{feedforward.1} parent=0 // pred_check
    _
  $region27: #{feedforward.1} parent=0 // pred_check_branch
    %542 = sbr.rel (0) target = $region29
  $region28: #{feedforward.1} parent=0 // pred_region
    _
  $region29: #{feedforward.1} parent=0 // pred_fallthru
    _

</llo_original>
